<compile_context>
chip_gen: v7x
topology: tpu7x:2x2x1
jax: 0.10.0
libtpu: 0.0.40
codegen_flags: <defaults>
</compile_context>

<pallas_src>
import functools

import jax
import jax.numpy as jnp
from jax.experimental import pallas as pl
from jax.experimental.pallas import tpu as pltpu

BN_EPS = 1e-3
NEG_BIG = -1e30  # fused-bias value for padded class columns -> exp() == 0


def _round_up(a, b):
    return (a + b - 1) // b * b


def _resident_spec(shape):
    """BlockSpec for an operand whose block never changes across the grid.

    Requests single-buffering (no need to double-buffer a resident weight);
    falls back to the default pipelining if pipeline_mode / pl.Buffered is
    unavailable in this JAX version.
    """
    index_map = lambda i: (0,) * len(shape)
    try:
        return pl.BlockSpec(shape, index_map, pipeline_mode=pl.Buffered(1))
    except Exception:  # pragma: no cover - older/newer API without pipeline_mode
        return pl.BlockSpec(shape, index_map)


def encoder_kernel(x_ref, w1_ref, b1_ref, w2_ref, b2_ref, o_ref):
    # ---- Linear 1 (bf16 MXU, f32 accumulate) + bias + ReLU ------------------
    h = jnp.dot(x_ref[...], w1_ref[...], preferred_element_type=jnp.float32)
    h = jnp.maximum(h + b1_ref[...], 0.0)

    # ---- Dropout(p=0.25): identity in inference mode ------------------------
    # TODO(synk): training-mode dropout would need pltpu.prng_seed +
    # pltpu.prng_random_bits masking; omitted (forward is eval-mode).

    # ---- Linear 2 (eval-mode BatchNorm pre-folded into w2/b2 on host) -------
    # Padded class columns have zero weights and bias NEG_BIG -> exp() == 0.
    z = jnp.dot(h.astype(w2_ref.dtype), w2_ref[...],
                preferred_element_type=jnp.float32) + b2_ref[...]

    # ---- Softmax(dim=1), exact normalization --------------------------------
    m = jnp.max(z, axis=-1, keepdims=True)
    e = jnp.exp(z - m)
    denom = jnp.sum(e, axis=-1, keepdims=True)
    o_ref[...] = (e / denom).astype(o_ref.dtype)


@functools.partial(jax.jit, static_argnames=("block_b", "use_bf16"))
def encoder_forward(x, params, block_b=512, use_bf16=True):
    """x: (B, input_dim) float32.  params: dict of weights (see init_params).

    block_b: batch tile for large batches (must be a multiple of 8; multiples
    of 256 fill MXU rows on v6e/v7x).  use_bf16: cast x/w1/w2 to bfloat16 for
    the matmuls (f32 accumulation).
    """
    B, D_in = x.shape
    H = params["w1"].shape[1]
    K = params["w2"].shape[1]
    H_pad = _round_up(H, 128)   # lane-dense hidden dim
    K_pad = _round_up(K, 128)   # lane-dense class dim

    # ---- Fold eval-mode BatchNorm1d into the second Linear (host side) -----
    scale = params["gamma"] * jax.lax.rsqrt(params["var"] + BN_EPS)   # (1, K)
    w2f = params["w2"] * scale                                        # (H, K)
    b2f = (params["b2"] - params["mean"]) * scale + params["beta"]    # (1, K)

    # ---- Lane-dense padding of parameters (numerically exact) --------------
    w1 = jnp.pad(params["w1"], ((0, 0), (0, H_pad - H)))              # zero cols
    b1 = jnp.pad(params["b1"], ((0, 0), (0, H_pad - H)))              # zero cols
    w2f = jnp.pad(w2f, ((0, H_pad - H), (0, K_pad - K)))              # zero rows/cols
    b2f = jnp.pad(b2f, ((0, 0), (0, K_pad - K)), constant_values=NEG_BIG)

    mm_dtype = jnp.bfloat16 if use_bf16 else jnp.float32
    x_mm = x.astype(mm_dtype)
    w1 = w1.astype(mm_dtype)
    w2f = w2f.astype(mm_dtype)
    b1 = b1.astype(jnp.float32)
    b2f = b2f.astype(jnp.float32)

    # ---- Batch tiling (no host padding of x; ragged last block is masked) --
    if B > block_b:
        bb = block_b                                  # many steps
    elif B > 256:
        bb = _round_up(pl.cdiv(B, 2), 256)            # >=2 steps -> both v7x TCs
    else:
        bb = min(B, block_b)                          # whole (small) batch
    n_blocks = pl.cdiv(B, bb)
    # TODO(synk): for very large input_dim on v7x (64 MiB VMEM), add a
    # contraction grid axis over D_in with a VMEM f32 accumulator instead of
    # loading the full (bb, D_in) slab.

    # ---- Explicit scoped-VMEM budget ----------------------------------------
    mm_isz = jnp.dtype(mm_dtype).itemsize
    vmem_need = (
        2 * bb * D_in * mm_isz                              # double-buffered x tile
        + 2 * bb * K_pad * 4                                # double-buffered out tile
        + 2 * (D_in * H_pad + H_pad * K_pad) * mm_isz       # weights (worst case 2x)
        + 4 * (H_pad + K_pad) * 4                           # biases
        + bb * (H_pad + K_pad) * 4                          # h / z live values
    )
    vmem_limit = int(min(max(vmem_need * 3 // 2, 32 << 20), 128 << 20))

    out = pl.pallas_call(
        encoder_kernel,
        out_shape=jax.ShapeDtypeStruct((B, K_pad), jnp.float32),
        grid_spec=pltpu.PrefetchScalarGridSpec(
            num_scalar_prefetch=0,
            grid=(n_blocks,),
            in_specs=[
                pl.BlockSpec((bb, D_in), lambda i: (i, 0)),   # x tile (moving)
                _resident_spec((D_in, H_pad)),                # w1
                _resident_spec((1, H_pad)),                   # b1
                _resident_spec((H_pad, K_pad)),               # w2 (BN-fused)
                _resident_spec((1, K_pad)),                   # b2 (BN-fused)
            ],
            out_specs=pl.BlockSpec((bb, K_pad), lambda i: (i, 0)),
        ),
        compiler_params=pltpu.CompilerParams(
            dimension_semantics=("parallel",),
            vmem_limit_bytes=vmem_limit),
    )(x_mm, w1, b1, w2f, b2f)

    # Padded class columns are exactly zero (exp(NEG_BIG) == 0); drop them.
    return out[:, :K]


def init_params(key, input_dim, hidden_dim, num_class):
    """Deterministic synthetic parameters matching the module's shapes."""
    ks = jax.random.split(key, 6)
    lim1 = 1.0 / jnp.sqrt(input_dim)
    lim2 = 1.0 / jnp.sqrt(hidden_dim)
    return {
        "w1": jax.random.uniform(ks[0], (input_dim, hidden_dim), jnp.float32,
                                 -lim1, lim1),
        "b1": jax.random.uniform(ks[1], (1, hidden_dim), jnp.float32,
                                 -lim1, lim1),
        "w2": jax.random.uniform(ks[2], (hidden_dim, num_class), jnp.float32,
                                 -lim2, lim2),
        "b2": jax.random.uniform(ks[3], (1, num_class), jnp.float32,
                                 -lim2, lim2),
        "gamma": jnp.ones((1, num_class), jnp.float32),
        "beta": jnp.zeros((1, num_class), jnp.float32),
        # running stats (buffers) -- perturbed so BN is non-trivial
        "mean": 0.1 * jax.random.normal(ks[4], (1, num_class), jnp.float32),
        "var": 1.0 + 0.1 * jax.random.uniform(ks[5], (1, num_class),
                                              jnp.float32),
    }


def encoder_reference(x, p):
    """Pure-JAX f32 reference (unfused BN, exact divide) for correctness check."""
    h = jnp.maximum(x @ p["w1"] + p["b1"], 0.0)
    z = h @ p["w2"] + p["b2"]
    z = (z - p["mean"]) / jnp.sqrt(p["var"] + BN_EPS) * p["gamma"] + p["beta"]
    return jax.nn.softmax(z, axis=1)


if __name__ == "__main__":
    key = jax.random.PRNGKey(0)
    k_x, k_p = jax.random.split(key)

    B, INPUT_DIM, HIDDEN_DIM, NUM_CLASS = 16, 64, 32, 16

    x = jax.random.normal(k_x, (B, INPUT_DIM), jnp.float32)
    params = init_params(k_p, INPUT_DIM, HIDDEN_DIM, NUM_CLASS)

    # Small batch: single grid step, whole batch in one tile.
    out = jax.block_until_ready(encoder_forward(x, params))
    ref = encoder_reference(x, params)
    assert out.shape == (B, NUM_CLASS)
    assert bool(jnp.all(jnp.isfinite(out)))
    # Exact-divide softmax -> rows sum to 1 up to f32 rounding.
    assert jnp.allclose(jnp.sum(out, axis=1), 1.0, atol=1e-4)
    # Tolerance reflects bf16 matmul inputs (f32 accumulation) vs f32 reference.
    assert jnp.allclose(out, ref, atol=1e-2, rtol=1e-2)

    # Ragged multi-step grid path: no host padding of x; the last block reads
    # garbage rows whose outputs are masked / never part of the (B2, K) result.
    B2 = 40
    x2 = jax.random.normal(jax.random.PRNGKey(1), (B2, INPUT_DIM), jnp.float32)
    out2 = jax.block_until_ready(encoder_forward(x2, params, block_b=16))
    ref2 = encoder_reference(x2, params)
    assert out2.shape == (B2, NUM_CLASS)
    assert jnp.allclose(jnp.sum(out2, axis=1), 1.0, atol=1e-4)
    assert jnp.allclose(out2, ref2, atol=1e-2, rtol=1e-2)

    print("KERNEL_OK")
</pallas_src>

<mosaic_0001>
module attributes {stable_mosaic.version = 11 : i64} {
  func.func @encoder_kernel(%arg0: i32, %arg1: memref<16x64xbf16, #tpu.memory_space<vmem>>, %arg2: memref<64x128xbf16, #tpu.memory_space<vmem>>, %arg3: memref<1x128xf32, #tpu.memory_space<vmem>>, %arg4: memref<128x128xbf16, #tpu.memory_space<vmem>>, %arg5: memref<1x128xf32, #tpu.memory_space<vmem>>, %arg6: memref<16x128xf32, #tpu.memory_space<vmem>>) attributes {dimension_semantics = [#tpu.dimension_semantics<parallel>], iteration_bounds = array<i64: 1>, scalar_prefetch = 0 : i64, scratch_operands = 0 : i64, tpu.core_type = #tpu.core_type<tc>, window_params = [{transform_indices = @transform_0, window_bounds = array<i64: 16, 64>}, {pipeline_mode = #tpu.pipeline_mode<synchronous>, transform_indices = @transform_1, window_bounds = array<i64: 64, 128>}, {pipeline_mode = #tpu.pipeline_mode<synchronous>, transform_indices = @transform_2, window_bounds = array<i64: 1, 128>}, {pipeline_mode = #tpu.pipeline_mode<synchronous>, transform_indices = @transform_3, window_bounds = array<i64: 128, 128>}, {pipeline_mode = #tpu.pipeline_mode<synchronous>, transform_indices = @transform_4, window_bounds = array<i64: 1, 128>}, {transform_indices = @transform_5, window_bounds = array<i64: 16, 128>}]} {
    %c0 = arith.constant 0 : index
    %c0_0 = arith.constant 0 : index
    %0 = vector.load %arg1[%c0, %c0_0] : memref<16x64xbf16, #tpu.memory_space<vmem>>, vector<16x64xbf16>
    %c0_1 = arith.constant 0 : index
    %c0_2 = arith.constant 0 : index
    %1 = vector.load %arg2[%c0_1, %c0_2] : memref<64x128xbf16, #tpu.memory_space<vmem>>, vector<64x128xbf16>
    %cst = arith.constant dense<0.000000e+00> : vector<16x128xf32>
    %2 = tpu.matmul %0, %1, %cst {dimension_numbers = #tpu.dot_dimension_numbers<[1], [0], [0], [1], [0, 0, 1, 1], [], []>} : vector<16x64xbf16>, vector<64x128xbf16>, vector<16x128xf32> -> vector<16x128xf32>
    %c0_3 = arith.constant 0 : index
    %c0_4 = arith.constant 0 : index
    %3 = vector.load %arg3[%c0_3, %c0_4] : memref<1x128xf32, #tpu.memory_space<vmem>>, vector<1x128xf32>
    %4 = vector.broadcast %3 : vector<1x128xf32> to vector<16x128xf32>
    %5 = arith.addf %2, %4 : vector<16x128xf32>
    %cst_5 = arith.constant 0.000000e+00 : f32
    %6 = vector.broadcast %cst_5 : f32 to vector<16x128xf32>
    %7 = arith.maximumf %5, %6 : vector<16x128xf32>
    %8 = arith.truncf %7 : vector<16x128xf32> to vector<16x128xbf16>
    %c0_6 = arith.constant 0 : index
    %c0_7 = arith.constant 0 : index
    %9 = vector.load %arg4[%c0_6, %c0_7] : memref<128x128xbf16, #tpu.memory_space<vmem>>, vector<128x128xbf16>
    %cst_8 = arith.constant dense<0.000000e+00> : vector<16x128xf32>
    %10 = tpu.matmul %8, %9, %cst_8 {dimension_numbers = #tpu.dot_dimension_numbers<[1], [0], [0], [1], [0, 0, 1, 1], [], []>} : vector<16x128xbf16>, vector<128x128xbf16>, vector<16x128xf32> -> vector<16x128xf32>
    %c0_9 = arith.constant 0 : index
    %c0_10 = arith.constant 0 : index
    %11 = vector.load %arg5[%c0_9, %c0_10] : memref<1x128xf32, #tpu.memory_space<vmem>>, vector<1x128xf32>
    %12 = vector.broadcast %11 : vector<1x128xf32> to vector<16x128xf32>
    %13 = arith.addf %10, %12 : vector<16x128xf32>
    %cst_11 = arith.constant dense<0xFF800000> : vector<16xf32>
    %14 = vector.multi_reduction <maximumf>, %13, %cst_11 [1] : vector<16x128xf32> to vector<16xf32>
    %15 = vector.shape_cast %14 : vector<16xf32> to vector<16x1xf32>
    %16 = vector.broadcast %15 : vector<16x1xf32> to vector<16x128xf32>
    %17 = arith.subf %13, %16 : vector<16x128xf32>
    %18 = math.exp %17 : vector<16x128xf32>
    %cst_12 = arith.constant dense<0.000000e+00> : vector<16xf32>
    %19 = vector.multi_reduction <add>, %18, %cst_12 [1] : vector<16x128xf32> to vector<16xf32>
    %20 = vector.shape_cast %19 : vector<16xf32> to vector<16x1xf32>
    %21 = vector.broadcast %20 : vector<16x1xf32> to vector<16x128xf32>
    %22 = arith.divf %18, %21 : vector<16x128xf32>
    %c0_13 = arith.constant 0 : index
    %c0_14 = arith.constant 0 : index
    %23 = vector.load %arg6[%c0_13, %c0_14] : memref<16x128xf32, #tpu.memory_space<vmem>>, vector<16x128xf32>
    tpu.vector_store %arg6[%c0_13, %c0_14], %22 {strides = array<i32>} : memref<16x128xf32, #tpu.memory_space<vmem>>, vector<16x128xf32>,
    return
  }
  func.func @transform_0(%arg0: i32) -> (i32, i32) {
    %c0_i32 = arith.constant 0 : i32
    %c0_i32_0 = arith.constant 0 : i32
    return %arg0, %c0_i32 : i32, i32
  }
  func.func @transform_1(%arg0: i32) -> (i32, i32) {
    %c0_i32 = arith.constant 0 : i32
    %c0_i32_0 = arith.constant 0 : i32
    %c0_i32_1 = arith.constant 0 : i32
    return %c0_i32, %c0_i32_0 : i32, i32
  }
  func.func @transform_2(%arg0: i32) -> (i32, i32) {
    %c0_i32 = arith.constant 0 : i32
    %c0_i32_0 = arith.constant 0 : i32
    %c0_i32_1 = arith.constant 0 : i32
    return %c0_i32, %c0_i32_0 : i32, i32
  }
  func.func @transform_3(%arg0: i32) -> (i32, i32) {
    %c0_i32 = arith.constant 0 : i32
    %c0_i32_0 = arith.constant 0 : i32
    %c0_i32_1 = arith.constant 0 : i32
    return %c0_i32, %c0_i32_0 : i32, i32
  }
  func.func @transform_4(%arg0: i32) -> (i32, i32) {
    %c0_i32 = arith.constant 0 : i32
    %c0_i32_0 = arith.constant 0 : i32
    %c0_i32_1 = arith.constant 0 : i32
    return %c0_i32, %c0_i32_0 : i32, i32
  }
  func.func @transform_5(%arg0: i32) -> (i32, i32) {
    %c0_i32 = arith.constant 0 : i32
    %c0_i32_0 = arith.constant 0 : i32
    return %arg0, %c0_i32 : i32, i32
  }
}

</mosaic_0001>

<llo_original>
// kernel: encoder_forward.1
$region0: #{encoder_forward.1}
  #allocation0 [shape = 'u32[]', space=smem, size = 0x4, offset = 0x4, fixed_abs, tag = 'smem constant byte address 0x4 - core index']
  #allocation1 [shape = 'u32[144,128]{1,0:T(1,128)}', space=vmem, size = 0x12000, scoped, tag = 'internal scratch']
  %s0 = inlined_call_operand.vmem [shape: bf16[16,64], index: 0, kind: input, shape index: {}]
  %s1 = inlined_call_operand.vmem [shape: bf16[64,128], index: 1, kind: input, shape index: {}]
  %s2 = inlined_call_operand.vmem [shape: f32[1,128], index: 2, kind: input, shape index: {}]
  %s3 = inlined_call_operand.vmem [shape: bf16[128,128], index: 3, kind: input, shape index: {}]
  %s4 = inlined_call_operand.vmem [shape: f32[1,128], index: 4, kind: input, shape index: {}]
  %s5 = inlined_call_operand.hbm [shape: f32[16,128], index: 5, kind: output, shape index: {}]
  %s6 = sld [smem:[#allocation0]]
  $region30: #{encoder_forward.1} parent=0
    _
  %s8 = ssub.s32 1, %s6
  %s9 = scalar_select 0, %s8, %s6
  $region1: #{encoder_forward.1} parent=0
    #allocation2 [shape = 'u8[8192]{0}', space=vmem, size = 0x2000, scoped, tag = 'output window, operand 0, single buffered']
    #allocation3 [shape = 's32[1]{0}', space=sflag, size = 0x4, scoped, tag = 'scoped memory for encoder_forward.1']
    %10 = vsyncpa [#allocation3], 0
    // Predicated region
    $region2: #{encoder_forward.1} parent=1 // pred_check
      _
    $region3: #{encoder_forward.1} parent=1 // pred_check_branch
      %12 = sbr.rel (0) target = $region5
    $region4: #{encoder_forward.1} parent=1 // pred_region
      _
    $region5: #{encoder_forward.1} parent=1 // pred_fallthru
      _
    // Predicated region
    $region6: #{encoder_forward.1} parent=1 // pred_check
      _
    $region7: #{encoder_forward.1} parent=1 // pred_check_branch
      %14 = sbr.rel (0) target = $region9
    $region8: #{encoder_forward.1} parent=1 // pred_region
      _
    $region9: #{encoder_forward.1} parent=1 // pred_fallthru
      _
    // Predicated region
    $region10: #{encoder_forward.1} parent=1 // pred_check
      _
    $region11: #{encoder_forward.1} parent=1 // pred_check_branch
      %16 = sbr.rel (0) target = $region13
    $region12: #{encoder_forward.1} parent=1 // pred_region
      _
    $region13: #{encoder_forward.1} parent=1 // pred_fallthru
      _
    // Predicated region
    $region14: #{encoder_forward.1} parent=1 // pred_check
      _
    $region15: #{encoder_forward.1} parent=1 // pred_check_branch
      %18 = sbr.rel (0) target = $region17
    $region16: #{encoder_forward.1} parent=1 // pred_region
      _
    $region17: #{encoder_forward.1} parent=1 // pred_fallthru
      _
    // Predicated region
    $region18: #{encoder_forward.1} parent=1 // pred_check
      _
    $region19: #{encoder_forward.1} parent=1 // pred_check_branch
      %20 = sbr.rel (0) target = $region21
    $region20: #{encoder_forward.1} parent=1 // pred_region
      _
    $region21: #{encoder_forward.1} parent=1 // pred_fallthru
      _
    %v22 = vld [vmem:[%s0] sm:$0xf]
    %v23 = vld [vmem:[%s0 + $0x4] sm:$0xf]
    %v24 = vld [vmem:[%s1] sm:$0xf]
    %v25 = vld [vmem:[%s1 + $0x4] sm:$0xf]
    %v26 = vld [vmem:[%s1 + $0x8] sm:$0xf]
    %v27 = vld [vmem:[%s1 + $0xc] sm:$0xf]
    %v28 = vld [vmem:[%s1 + $0x10] sm:$0xf]
    %v29 = vld [vmem:[%s1 + $0x14] sm:$0xf]
    %v30 = vld [vmem:[%s1 + $0x18] sm:$0xf]
    %v31 = vld [vmem:[%s1 + $0x1c] sm:$0xf]
    %v32 = vld [vmem:[%s2] sm:$0x1]
    %v34 = vlaneseq
    %v35 = vshrl.u32 %v34, 7
    %v36 = vsub.s32 0, %v35
    %v37 = vrot.slane %v32, %v36
    %v41 = vunpack.c.l.b16 %v22
    %v42 = vunpack.c.l.b16 %v23
    %v43 = vpack.c.b16 %v42, %v41
    %v52 = vunpack.c.l.b16 %v24
    %v53 = vunpack.c.l.b16 %v25
    %v54 = vunpack.c.l.b16 %v26
    %v55 = vunpack.c.l.b16 %v27
    %v56 = vunpack.c.l.b16 %v28
    %v57 = vunpack.c.l.b16 %v29
    %v58 = vunpack.c.l.b16 %v30
    %v59 = vunpack.c.l.b16 %v31
    %v60 = vpack.c.b16 %v53, %v52
    %v61 = vpack.c.b16 %v55, %v54
    %v62 = vpack.c.b16 %v57, %v56
    %v63 = vpack.c.b16 %v59, %v58
    %vm68 = vcmask 523264
    %v70 = vsel %vm68, %v43, 0
    %72 = vmatprep.subr.bf16.mxu0 0
    %73 = vmatpush1.bf16.msra.mxu0 %v60
    %74 = vmatprep.subr.bf16.mxu0 0
    %75 = vmatpush1.bf16.msra.mxu0 %v61
    %76 = vmatprep.subr.bf16.mxu0 0
    %77 = vmatpush1.bf16.msra.mxu0 %v62
    %78 = vmatprep.subr.bf16.mxu0 0
    %79 = vmatpush1.bf16.msra.mxu0 %v63
    %80 = vmatprep.subr.bf16.mxu0 0
    %81 = vmatpush1.bf16.msra.mxu0 0
    %82 = vmatprep.subr.bf16.mxu0 0
    %83 = vmatpush1.bf16.msra.mxu0 0
    %84 = vmatprep.subr.bf16.mxu0 0
    %85 = vmatpush1.bf16.msra.mxu0 0
    %86 = vmatprep.subr.bf16.mxu0 0
    %87 = vmatpush1.bf16.msra.mxu0 0
    %88 = vmatprep.subr.bf16.mxu0 0
    %89 = vmatpush1.bf16.msra.mxu0 0
    %90 = vmatprep.subr.bf16.mxu0 0
    %91 = vmatpush1.bf16.msra.mxu0 0
    %92 = vmatprep.subr.bf16.mxu0 0
    %93 = vmatpush1.bf16.msra.mxu0 0
    %94 = vmatprep.subr.bf16.mxu0 0
    %95 = vmatpush1.bf16.msra.mxu0 0
    %96 = vmatprep.subr.bf16.mxu0 0
    %97 = vmatpush1.bf16.msra.mxu0 0
    %98 = vmatprep.subr.bf16.mxu0 0
    %99 = vmatpush1.bf16.msra.mxu0 0
    %100 = vmatprep.subr.bf16.mxu0 0
    %101 = vmatpush1.bf16.msra.mxu0 0
    %102 = vmatprep.subr.bf16.mxu0 0
    %103 = vmatpush1.bf16.msra.mxu0 0
    %104 = vmatprep.mubr.bf16.mxu0 0
    %105 = vmatmul.mubr.bf16.gmra.mrb[0].mxu0 %v70
    %v106 = vpop.f32.mrb[0].mxu0
    %v107 = vadd.f32 %v37, %v106
    %v108 = vpop.f32.mrb[0].mxu0
    %v109 = vpop.f32.mrb[0].mxu0
    %v110 = vadd.f32 %v37, %v109
    %v111 = vpop.f32.mrb[0].mxu0
    %112 = vdwg.mxu0
    %v113 = vmax.f32 %v107, 0.0
    %v114 = vmax.f32 %v110, 0.0
    %v115 = vpack.c.bf16 %v114, %v113
    %v116 = vld [vmem:[%s3] sm:$0xf]
    %v117 = vld [vmem:[%s3 + $0x4] sm:$0xf]
    %v118 = vld [vmem:[%s3 + $0x8] sm:$0xf]
    %v119 = vld [vmem:[%s3 + $0xc] sm:$0xf]
    %v120 = vld [vmem:[%s3 + $0x10] sm:$0xf]
    %v121 = vld [vmem:[%s3 + $0x14] sm:$0xf]
    %v122 = vld [vmem:[%s3 + $0x18] sm:$0xf]
    %v123 = vld [vmem:[%s3 + $0x1c] sm:$0xf]
    %v124 = vld [vmem:[%s3 + $0x20] sm:$0xf]
    %v125 = vld [vmem:[%s3 + $0x24] sm:$0xf]
    %v126 = vld [vmem:[%s3 + $0x28] sm:$0xf]
    %v127 = vld [vmem:[%s3 + $0x2c] sm:$0xf]
    %v128 = vld [vmem:[%s3 + $0x30] sm:$0xf]
    %v129 = vld [vmem:[%s3 + $0x34] sm:$0xf]
    %v130 = vld [vmem:[%s3 + $0x38] sm:$0xf]
    %v131 = vld [vmem:[%s3 + $0x3c] sm:$0xf]
    %v132 = vld [vmem:[%s4] sm:$0x1]
    %v134 = vlaneseq
    %v135 = vshrl.u32 %v134, 7
    %v136 = vsub.s32 0, %v135
    %v137 = vrot.slane %v132, %v136
    %v155 = vunpack.c.l.b16 %v116
    %v156 = vunpack.c.l.b16 %v117
    %v157 = vunpack.c.l.b16 %v118
    %v158 = vunpack.c.l.b16 %v119
    %v159 = vunpack.c.l.b16 %v120
    %v160 = vunpack.c.l.b16 %v121
    %v161 = vunpack.c.l.b16 %v122
    %v162 = vunpack.c.l.b16 %v123
    %v163 = vunpack.c.l.b16 %v124
    %v164 = vunpack.c.l.b16 %v125
    %v165 = vunpack.c.l.b16 %v126
    %v166 = vunpack.c.l.b16 %v127
    %v167 = vunpack.c.l.b16 %v128
    %v168 = vunpack.c.l.b16 %v129
    %v169 = vunpack.c.l.b16 %v130
    %v170 = vunpack.c.l.b16 %v131
    %v171 = vpack.c.b16 %v156, %v155
    %v172 = vpack.c.b16 %v158, %v157
    %v173 = vpack.c.b16 %v160, %v159
    %v174 = vpack.c.b16 %v162, %v161
    %v175 = vpack.c.b16 %v164, %v163
    %v176 = vpack.c.b16 %v166, %v165
    %v177 = vpack.c.b16 %v168, %v167
    %v178 = vpack.c.b16 %v170, %v169
    %187 = vmatprep.subr.bf16.mxu0 0
    %188 = vmatpush1.bf16.msra.mxu0 %v171
    %189 = vmatprep.subr.bf16.mxu0 0
    %190 = vmatpush1.bf16.msra.mxu0 %v172
    %191 = vmatprep.subr.bf16.mxu0 0
    %192 = vmatpush1.bf16.msra.mxu0 %v173
    %193 = vmatprep.subr.bf16.mxu0 0
    %194 = vmatpush1.bf16.msra.mxu0 %v174
    %195 = vmatprep.subr.bf16.mxu0 0
    %196 = vmatpush1.bf16.msra.mxu0 %v175
    %197 = vmatprep.subr.bf16.mxu0 0
    %198 = vmatpush1.bf16.msra.mxu0 %v176
    %199 = vmatprep.subr.bf16.mxu0 0
    %200 = vmatpush1.bf16.msra.mxu0 %v177
    %201 = vmatprep.subr.bf16.mxu0 0
    %202 = vmatpush1.bf16.msra.mxu0 %v178
    %203 = vmatprep.subr.bf16.mxu0 0
    %204 = vmatpush1.bf16.msra.mxu0 0
    %205 = vmatprep.subr.bf16.mxu0 0
    %206 = vmatpush1.bf16.msra.mxu0 0
    %207 = vmatprep.subr.bf16.mxu0 0
    %208 = vmatpush1.bf16.msra.mxu0 0
    %209 = vmatprep.subr.bf16.mxu0 0
    %210 = vmatpush1.bf16.msra.mxu0 0
    %211 = vmatprep.subr.bf16.mxu0 0
    %212 = vmatpush1.bf16.msra.mxu0 0
    %213 = vmatprep.subr.bf16.mxu0 0
    %214 = vmatpush1.bf16.msra.mxu0 0
    %215 = vmatprep.subr.bf16.mxu0 0
    %216 = vmatpush1.bf16.msra.mxu0 0
    %217 = vmatprep.subr.bf16.mxu0 0
    %218 = vmatpush1.bf16.msra.mxu0 0
    %219 = vmatprep.mubr.bf16.mxu0 0
    %220 = vmatmul.mubr.bf16.gmra.mrb[0].mxu0 %v115
    %v221 = vpop.f32.mrb[0].mxu0
    %v222 = vadd.f32 %v137, %v221
    %v223 = vpop.f32.mrb[0].mxu0
    %v224 = vpop.f32.mrb[0].mxu0
    %v225 = vadd.f32 %v137, %v224
    %v226 = vpop.f32.mrb[0].mxu0
    %227 = vdwg.mxu0
    %228 = vmax.xlane.f32.xlu0 %v222
    %v229 = vpop.xlane.xlu0 %228
    %230 = vmax.xlane.f32.xlu0 %v225
    %v231 = vpop.xlane.xlu0 %230
    %v232 = vsub.f32 %v222, %v229
    %v233 = vsub.f32 %v225, %v231
    %v234 = vmul.f32 %v232, 1.442695
    %v235 = vpow.pop %v234
    %v236 = vmul.f32 %v233, 1.442695
    %v237 = vpow.pop %v236
    %238 = vadd.xlane.f32.xlu0 %v235
    %v239 = vpop.xlane.xlu0 %238
    %240 = vadd.xlane.f32.xlu0 %v237
    %v241 = vpop.xlane.xlu0 %240
    %v242 = vrcp.pop %v239
    %v243 = vmul.f32 %v235, %v242
    %v244 = vrcp.pop %v241
    %v245 = vmul.f32 %v237, %v244
    %246 = vst [vmem:[#allocation2] sm:$0xff] %v243
    %247 = vst [vmem:[#allocation2 + $0x8] sm:$0xff] %v245
    // Predicated region
    $region22: #{encoder_forward.1} parent=1 // pred_check
      _
    $region23: #{encoder_forward.1} parent=1 // pred_check_branch
      %249 = sbr.rel (0) target = $region25
    $region24: #{encoder_forward.1} parent=1 // pred_region
      %s251 = ssub.s32 256, 256
      %252 = vsyncadd [#allocation3], %s251
      %s253 = sshll.u32 [#allocation2], 4
      %s254 = int_to_ptr.vmem [resolvable:$true] %s253
      %259 = dma.vmem_to_hbm [thread:$0]  %s254, 256, %s5, [#allocation3], 128, 128, 8
    $region25: #{encoder_forward.1} parent=1 // pred_fallthru
      _
    // Predicated region
    $region26: #{encoder_forward.1} parent=1 // pred_check
      _
    $region27: #{encoder_forward.1} parent=1 // pred_check_branch
      %261 = sbr.rel (0) target = $region29
    $region28: #{encoder_forward.1} parent=1 // pred_region
      %262 = dma.done [#allocation3], 256
    $region29: #{encoder_forward.1} parent=1 // pred_fallthru
      _
    %263 = vsyncpa [#allocation3], 1

</llo_original>
